<compile_context>
chip_gen: v7x
topology: tpu7x:2x2x1
jax: 0.10.0
libtpu: 0.0.40
codegen_flags: <defaults>
</compile_context>

<pallas_src>
import functools

import jax
import jax.numpy as jnp
from jax.experimental import pallas as pl
from jax.experimental.pallas import tpu as pltpu


def _se_reponse_kernel(x_ref, w1c_ref, w2t_ref, bcast_ref, o_ref):
    # x_ref:     (TB, T*R)   input dtype
    # w1c_ref:   (T*R, Epad) f32   fused (mean-pooling @ w1.T) / R
    # w2t_ref:   (Epad, T)   f32   padded w2.T
    # bcast_ref: (T, T*R)    f32   0/1 broadcast matrix (t -> t*R + r)
    # o_ref:     (TB, T*R)   output dtype

    # fc1 fused with the mean over R:  h = relu(mean_r(x) @ w1.T) == relu(x @ w1c)
    h = jnp.maximum(
        jnp.dot(x_ref[...], w1c_ref[...], preferred_element_type=jnp.float32), 0.0
    )                                                                     # (TB, Epad)
    z = jnp.dot(h, w2t_ref[...], preferred_element_type=jnp.float32)      # (TB, T)

    # exact softmax over the nTree axis (mem-bound kernel: exact divide is free)
    z = z - jnp.max(z, axis=-1, keepdims=True)
    e = jnp.exp(z)
    s = e / jnp.sum(e, axis=-1, keepdims=True)                            # (TB, T)

    # broadcast s[b, t] to every (t, r) lane via the 0/1 matrix (exact)
    s_exp = jnp.dot(s, bcast_ref[...], preferred_element_type=jnp.float32)  # (TB, TR)

    # Re-read x here (short live range), multiply in f32, cast only the product.
    o_ref[...] = (x_ref[...].astype(jnp.float32) * s_exp).astype(o_ref.dtype)


def _choose_block_b(B, TR, dtype):
    itemsize = jnp.dtype(dtype).itemsize
    # Minimum legal sublane tile per dtype (8 for 4B, 16 for 2B, 32 for 1B).
    align = {4: 8, 2: 16, 1: 32}.get(itemsize, 8)
    if B <= align:
        return B  # tiny batch: single full-array block (always legal)
    # VMEM budget: double-buffered in + out tiles plus ~2 f32-wide temps,
    # kept under ~24 MiB so it fits the 32 MiB scoped limit on every chip gen
    # (and well inside v7x's 64 MiB physical VMEM).
    row_bytes = 4 * TR * itemsize + 2 * TR * 4
    budget_rows = (24 * 1024 * 1024) // row_bytes
    # Target >= 4 grid steps so the "parallel" batch axis shards across the
    # two v7x TensorCores and keeps the double-buffer pipeline fed.
    target = -(-B // 4)  # ceil-div
    tb = min(budget_rows, target)
    tb = max(align, (tb // align) * align)
    return min(tb, B)


@functools.partial(jax.jit, static_argnames=("block_b",))
def se_reponse_pallas(x, w1, w2, *, block_b=None):
    B, T, R = x.shape
    nEmbed = w1.shape[0]
    assert w1.shape == (nEmbed, T) and w2.shape == (T, nEmbed)
    TR = T * R

    # Zero-pad the embedding dim up to a multiple of 8 (min 8); exactly neutral:
    # extra hidden units are relu(0)=0 hitting zero rows of w2.
    e_pad = max(8, ((nEmbed + 7) // 8) * 8)
    w1t = jnp.zeros((T, e_pad), jnp.float32).at[:, :nEmbed].set(w1.T.astype(jnp.float32))
    w2t = jnp.zeros((e_pad, T), jnp.float32).at[:nEmbed, :].set(w2.T.astype(jnp.float32))

    # 0/1 matrices mapping flattened index t*R + r <-> tree index t.
    tree_of = jnp.arange(TR) // R
    sel = tree_of[:, None] == jnp.arange(T)[None, :]          # (TR, T) bool
    pool = sel.astype(jnp.float32)
    bcast = sel.T.astype(jnp.float32)                         # (T, TR)

    # Fuse the mean-over-R pooling into fc1's weights:  x @ w1c == mean_r(x) @ w1.T
    w1c = (pool @ w1t) * (1.0 / R)                            # (TR, e_pad) f32

    tb = _choose_block_b(B, TR, x.dtype) if block_b is None else block_b
    grid_b = pl.cdiv(B, tb)

    x2d = x.reshape(B, TR)

    cost = pl.CostEstimate(
        flops=int(2 * B * TR * e_pad      # fused fc1 matmul
                  + 2 * B * e_pad * T     # fc2 matmul
                  + 2 * B * T * TR        # broadcast matmul
                  + 2 * B * TR),          # elementwise scale / softmax bits
        transcendentals=int(B * T),
        bytes_accessed=int(2 * B * TR * x.dtype.itemsize
                           + (TR * e_pad + e_pad * T + T * TR) * 4),
    )

    def _const_spec(shape):
        # Block index never changes across the grid: single-buffer it.
        return pl.BlockSpec(shape, lambda b: (0, 0), pipeline_mode=pl.Buffered(1))

    out2d = pl.pallas_call(
        _se_reponse_kernel,
        out_shape=jax.ShapeDtypeStruct((B, TR), x.dtype),
        grid_spec=pltpu.PrefetchScalarGridSpec(
            num_scalar_prefetch=0,
            grid=(grid_b,),
            in_specs=[
                pl.BlockSpec((tb, TR), lambda b: (b, 0)),
                _const_spec((TR, e_pad)),
                _const_spec((e_pad, T)),
                _const_spec((T, TR)),
            ],
            out_specs=pl.BlockSpec((tb, TR), lambda b: (b, 0)),
        ),
        compiler_params=pltpu.CompilerParams(
            dimension_semantics=("parallel",),
            vmem_limit_bytes=32 * 1024 * 1024,
        ),
        cost_estimate=cost,
    )(x2d, w1c, w2t, bcast)

    return out2d.reshape(B, T, R)


def se_reponse_ref(x, w1, w2):
    # pure-JAX reference of the PyTorch forward
    y = jnp.mean(x, axis=-1)                       # (B, T)
    h = jnp.maximum(y @ w1.T, 0.0)                 # (B, nEmbed)
    s = jax.nn.softmax(h @ w2.T, axis=-1)          # (B, T)
    return x * s[:, :, None]


if __name__ == "__main__":
    # small shapes consistent with the module
    B, nTree, R = 16, 8, 16
    reduction = 16
    nEmbed = max(2, nTree // reduction)

    key = jax.random.PRNGKey(0)
    kx, k1, k2 = jax.random.split(key, 3)

    x = jax.random.normal(kx, (B, nTree, R), dtype=jnp.float32)
    # deterministic weight init (torch Linear convention: (out_features, in_features))
    w1 = jax.random.normal(k1, (nEmbed, nTree), dtype=jnp.float32) * (1.0 / jnp.sqrt(nTree))
    w2 = jax.random.normal(k2, (nTree, nEmbed), dtype=jnp.float32) * (1.0 / jnp.sqrt(nEmbed))

    out = se_reponse_pallas(x, w1, w2)
    jax.block_until_ready(out)

    ref = se_reponse_ref(x, w1, w2)
    assert out.shape == (B, nTree, R)
    assert jnp.allclose(out, ref, atol=1e-4, rtol=1e-4), "mismatch vs reference"

    print("KERNEL_OK")
</pallas_src>

<mosaic_0001>
module attributes {stable_mosaic.version = 11 : i64} {
  func.func @_se_reponse_kernel(%arg0: i32, %arg1: memref<8x128xf32, #tpu.memory_space<vmem>>, %arg2: memref<128x8xf32, #tpu.memory_space<vmem>>, %arg3: memref<8x8xf32, #tpu.memory_space<vmem>>, %arg4: memref<8x128xf32, #tpu.memory_space<vmem>>, %arg5: memref<8x128xf32, #tpu.memory_space<vmem>>) attributes {dimension_semantics = [#tpu.dimension_semantics<parallel>], iteration_bounds = array<i64: 2>, scalar_prefetch = 0 : i64, scratch_operands = 0 : i64, tpu.core_type = #tpu.core_type<tc>, window_params = [{transform_indices = @transform_0, window_bounds = array<i64: 8, 128>}, {pipeline_mode = #tpu.pipeline_mode<synchronous>, transform_indices = @transform_1, window_bounds = array<i64: 128, 8>}, {pipeline_mode = #tpu.pipeline_mode<synchronous>, transform_indices = @transform_2, window_bounds = array<i64: 8, 8>}, {pipeline_mode = #tpu.pipeline_mode<synchronous>, transform_indices = @transform_3, window_bounds = array<i64: 8, 128>}, {transform_indices = @transform_4, window_bounds = array<i64: 8, 128>}]} {
    %c0 = arith.constant 0 : index
    %c0_0 = arith.constant 0 : index
    %0 = vector.load %arg1[%c0, %c0_0] : memref<8x128xf32, #tpu.memory_space<vmem>>, vector<8x128xf32>
    %c0_1 = arith.constant 0 : index
    %c0_2 = arith.constant 0 : index
    %1 = vector.load %arg2[%c0_1, %c0_2] : memref<128x8xf32, #tpu.memory_space<vmem>>, vector<128x8xf32>
    %cst = arith.constant dense<0.000000e+00> : vector<8x8xf32>
    %2 = tpu.matmul %0, %1, %cst {dimension_numbers = #tpu.dot_dimension_numbers<[1], [0], [0], [1], [0, 0, 1, 1], [], []>} : vector<8x128xf32>, vector<128x8xf32>, vector<8x8xf32> -> vector<8x8xf32>
    %cst_3 = arith.constant 0.000000e+00 : f32
    %3 = vector.broadcast %cst_3 : f32 to vector<8x8xf32>
    %4 = arith.maximumf %2, %3 : vector<8x8xf32>
    %c0_4 = arith.constant 0 : index
    %c0_5 = arith.constant 0 : index
    %5 = vector.load %arg3[%c0_4, %c0_5] : memref<8x8xf32, #tpu.memory_space<vmem>>, vector<8x8xf32>
    %cst_6 = arith.constant dense<0.000000e+00> : vector<8x8xf32>
    %6 = tpu.matmul %4, %5, %cst_6 {dimension_numbers = #tpu.dot_dimension_numbers<[1], [0], [0], [1], [0, 0, 1, 1], [], []>} : vector<8x8xf32>, vector<8x8xf32>, vector<8x8xf32> -> vector<8x8xf32>
    %cst_7 = arith.constant dense<0xFF800000> : vector<8xf32>
    %7 = vector.multi_reduction <maximumf>, %6, %cst_7 [1] : vector<8x8xf32> to vector<8xf32>
    %8 = vector.shape_cast %7 : vector<8xf32> to vector<8x1xf32>
    %9 = vector.broadcast %8 : vector<8x1xf32> to vector<8x8xf32>
    %10 = arith.subf %6, %9 : vector<8x8xf32>
    %11 = math.exp %10 : vector<8x8xf32>
    %cst_8 = arith.constant dense<0.000000e+00> : vector<8xf32>
    %12 = vector.multi_reduction <add>, %11, %cst_8 [1] : vector<8x8xf32> to vector<8xf32>
    %13 = vector.shape_cast %12 : vector<8xf32> to vector<8x1xf32>
    %14 = vector.broadcast %13 : vector<8x1xf32> to vector<8x8xf32>
    %15 = arith.divf %11, %14 : vector<8x8xf32>
    %c0_9 = arith.constant 0 : index
    %c0_10 = arith.constant 0 : index
    %16 = vector.load %arg4[%c0_9, %c0_10] : memref<8x128xf32, #tpu.memory_space<vmem>>, vector<8x128xf32>
    %cst_11 = arith.constant dense<0.000000e+00> : vector<8x128xf32>
    %17 = tpu.matmul %15, %16, %cst_11 {dimension_numbers = #tpu.dot_dimension_numbers<[1], [0], [0], [1], [0, 0, 1, 1], [], []>} : vector<8x8xf32>, vector<8x128xf32>, vector<8x128xf32> -> vector<8x128xf32>
    %c0_12 = arith.constant 0 : index
    %c0_13 = arith.constant 0 : index
    %18 = vector.load %arg1[%c0_12, %c0_13] : memref<8x128xf32, #tpu.memory_space<vmem>>, vector<8x128xf32>
    %19 = arith.mulf %18, %17 : vector<8x128xf32>
    %c0_14 = arith.constant 0 : index
    %c0_15 = arith.constant 0 : index
    %20 = vector.load %arg5[%c0_14, %c0_15] : memref<8x128xf32, #tpu.memory_space<vmem>>, vector<8x128xf32>
    tpu.vector_store %arg5[%c0_14, %c0_15], %19 {strides = array<i32>} : memref<8x128xf32, #tpu.memory_space<vmem>>, vector<8x128xf32>,
    return
  }
  func.func @transform_0(%arg0: i32) -> (i32, i32) {
    %c0_i32 = arith.constant 0 : i32
    %c0_i32_0 = arith.constant 0 : i32
    return %arg0, %c0_i32 : i32, i32
  }
  func.func @transform_1(%arg0: i32) -> (i32, i32) {
    %c0_i32 = arith.constant 0 : i32
    %c0_i32_0 = arith.constant 0 : i32
    %c0_i32_1 = arith.constant 0 : i32
    return %c0_i32, %c0_i32_0 : i32, i32
  }
  func.func @transform_2(%arg0: i32) -> (i32, i32) {
    %c0_i32 = arith.constant 0 : i32
    %c0_i32_0 = arith.constant 0 : i32
    %c0_i32_1 = arith.constant 0 : i32
    return %c0_i32, %c0_i32_0 : i32, i32
  }
  func.func @transform_3(%arg0: i32) -> (i32, i32) {
    %c0_i32 = arith.constant 0 : i32
    %c0_i32_0 = arith.constant 0 : i32
    %c0_i32_1 = arith.constant 0 : i32
    return %c0_i32, %c0_i32_0 : i32, i32
  }
  func.func @transform_4(%arg0: i32) -> (i32, i32) {
    %c0_i32 = arith.constant 0 : i32
    %c0_i32_0 = arith.constant 0 : i32
    return %arg0, %c0_i32 : i32, i32
  }
}

</mosaic_0001>

<llo_original>
// kernel: se_reponse_pallas.1
$region0: #{se_reponse_pallas.1}
  #allocation0 [shape = 'u32[]', space=smem, size = 0x4, offset = 0x4, fixed_abs, tag = 'smem constant byte address 0x4 - core index']
  #allocation1 [shape = 'u32[144,128]{1,0:T(1,128)}', space=vmem, size = 0x12000, scoped, tag = 'internal scratch']
  %s0 = inlined_call_operand.vmem [shape: f32[16,128], index: 0, kind: input, shape index: {}]
  %s1 = inlined_call_operand.vmem [shape: f32[128,8], index: 1, kind: input, shape index: {}]
  %s2 = inlined_call_operand.vmem [shape: f32[8,8], index: 2, kind: input, shape index: {}]
  %s3 = inlined_call_operand.vmem [shape: f32[8,128], index: 3, kind: input, shape index: {}]
  %s4 = inlined_call_operand.vmem [shape: f32[16,128], index: 4, kind: output, shape index: {}]
  %s5 = sld [smem:[#allocation0]]
  $region49: #{se_reponse_pallas.1} parent=0
    _
  %s7 = ssub.s32 1, %s5
  %s8 = scalar_select 0, %s7, %s5
  loop: start=0, step=1, limit=4
  $region2: #{se_reponse_pallas.1} parent=0 // loop_pre_header
    _
  $region3: #{se_reponse_pallas.1} parent=0 // loop_header
    %s10 = sphi 0, %s14
    %p11 = scmp.ge.s32.totalorder %s10, 4
    %s20 = sphi 0, %s22
    %s23 = sphi 0, %s20
    %s24 = sphi 0, %s23
    %s40 = sphi 0, %s24
    %s44 = sphi 0, %s44
    %s46 = sphi 0, %s44
    %s47 = sphi 0, %s46
    %s61 = sphi 0, %s47
    %s65 = sphi 0, %s65
    %s67 = sphi 0, %s65
    %s68 = sphi 0, %s67
    %s82 = sphi 0, %s68
    %s86 = sphi 0, %s86
    %s88 = sphi 0, %s86
    %s89 = sphi 0, %s88
    %s103 = sphi 0, %s89
    %s109 = sphi 0, %s111
    %s112 = sphi 0, %s109
    %s113 = sphi 0, %s112
    %s129 = sphi 0, %s113
  $region4: #{se_reponse_pallas.1} parent=0 // loop_header_branch
    %13 = sbr.rel (%p11) target = $region8
  $region5: #{se_reponse_pallas.1} parent=0 // loop_body
    %s15 = ssub.s32 %s10, 1
    %s16 = ssub.s32 %s10, 2
    %s17 = sadd.s32 %s10, 1
    %s18 = ssub.s32 %s10, %s17
    %p19 = scmp.eq.s32.totalorder %s18, 0
    %s21 = sadd.s32 %s20, 1
    %s22 = scalar_select %p19, %s20, %s21
    %p25 = pneg %p19
    %p26 = scmp.eq.s32.totalorder %s10, 1
    %p27 = por %p25, %p26
    %p28 = scmp.ne.s32.totalorder %s20, %s23
    %p29 = scmp.eq.s32.totalorder %s10, 0
    %p30 = por %p28, %p29
    %p31 = scmp.ne.s32.totalorder %s20, %s23
    %p32 = scmp.eq.s32.totalorder %s15, 1
    %p33 = por %p31, %p32
    %p34 = scmp.ne.s32.totalorder %s23, %s24
    %p35 = scmp.eq.s32.totalorder %s15, 0
    %p36 = por %p34, %p35
    %p37 = scmp.ne.s32.totalorder %s23, %s24
    %p38 = scmp.eq.s32.totalorder %s16, 1
    %p39 = por %p37, %p38
    %p41 = scmp.ne.s32.totalorder %s24, %s40
    %p42 = scmp.eq.s32.totalorder %s16, 0
    %p43 = por %p41, %p42
    %s45 = sadd.s32 %s44, 1
    %p48 = scmp.eq.s32.totalorder %s10, 1
    %p49 = scmp.ne.s32.totalorder %s44, %s46
    %p50 = scmp.eq.s32.totalorder %s10, 0
    %p51 = por %p49, %p50
    %p52 = scmp.ne.s32.totalorder %s44, %s46
    %p53 = scmp.eq.s32.totalorder %s15, 1
    %p54 = por %p52, %p53
    %p55 = scmp.ne.s32.totalorder %s46, %s47
    %p56 = scmp.eq.s32.totalorder %s15, 0
    %p57 = por %p55, %p56
    %p58 = scmp.ne.s32.totalorder %s46, %s47
    %p59 = scmp.eq.s32.totalorder %s16, 1
    %p60 = por %p58, %p59
    %p62 = scmp.ne.s32.totalorder %s47, %s61
    %p63 = scmp.eq.s32.totalorder %s16, 0
    %p64 = por %p62, %p63
    %s66 = sadd.s32 %s65, 1
    %p69 = scmp.eq.s32.totalorder %s10, 1
    %p70 = scmp.ne.s32.totalorder %s65, %s67
    %p71 = scmp.eq.s32.totalorder %s10, 0
    %p72 = por %p70, %p71
    %p73 = scmp.ne.s32.totalorder %s65, %s67
    %p74 = scmp.eq.s32.totalorder %s15, 1
    %p75 = por %p73, %p74
    %p76 = scmp.ne.s32.totalorder %s67, %s68
    %p77 = scmp.eq.s32.totalorder %s15, 0
    %p78 = por %p76, %p77
    %p79 = scmp.ne.s32.totalorder %s67, %s68
    %p80 = scmp.eq.s32.totalorder %s16, 1
    %p81 = por %p79, %p80
    %p83 = scmp.ne.s32.totalorder %s68, %s82
    %p84 = scmp.eq.s32.totalorder %s16, 0
    %p85 = por %p83, %p84
    %s87 = sadd.s32 %s86, 1
    %p90 = scmp.eq.s32.totalorder %s10, 1
    %p91 = scmp.ne.s32.totalorder %s86, %s88
    %p92 = scmp.eq.s32.totalorder %s10, 0
    %p93 = por %p91, %p92
    %p94 = scmp.ne.s32.totalorder %s86, %s88
    %p95 = scmp.eq.s32.totalorder %s15, 1
    %p96 = por %p94, %p95
    %p97 = scmp.ne.s32.totalorder %s88, %s89
    %p98 = scmp.eq.s32.totalorder %s15, 0
    %p99 = por %p97, %p98
    %p100 = scmp.ne.s32.totalorder %s88, %s89
    %p101 = scmp.eq.s32.totalorder %s16, 1
    %p102 = por %p100, %p101
    %p104 = scmp.ne.s32.totalorder %s89, %s103
    %p105 = scmp.eq.s32.totalorder %s16, 0
    %p106 = por %p104, %p105
    %s107 = ssub.s32 %s10, %s17
    %p108 = scmp.eq.s32.totalorder %s107, 0
    %s110 = sadd.s32 %s109, 1
    %s111 = scalar_select %p108, %s109, %s110
    %p114 = pneg %p108
    %p115 = scmp.eq.s32.totalorder %s10, 1
    %p116 = por %p114, %p115
    %p117 = scmp.ne.s32.totalorder %s109, %s112
    %p118 = scmp.eq.s32.totalorder %s10, 0
    %p119 = por %p117, %p118
    %p120 = scmp.ne.s32.totalorder %s109, %s112
    %p121 = scmp.eq.s32.totalorder %s15, 1
    %p122 = por %p120, %p121
    %p123 = scmp.ne.s32.totalorder %s112, %s113
    %p124 = scmp.eq.s32.totalorder %s15, 0
    %p125 = por %p123, %p124
    %p126 = scmp.ne.s32.totalorder %s112, %s113
    %p127 = scmp.eq.s32.totalorder %s16, 1
    %p128 = por %p126, %p127
    %p130 = scmp.ne.s32.totalorder %s113, %s129
    %p131 = scmp.eq.s32.totalorder %s16, 0
    %p132 = por %p130, %p131
    %p133 = scmp.le.s32.totalorder 1, %s10
    %p134 = scmp.lt.s32.totalorder %s10, 3
    %p135 = pnand %p133, %p134
    %p136 = pneg %p135
    // Predicated region
    $region9: #{se_reponse_pallas.1} parent=5 // pred_check
      _
    $region10: #{se_reponse_pallas.1} parent=5 // pred_check_branch
      %138 = sbr.rel (%p135) target = $region12
    $region11: #{se_reponse_pallas.1} parent=5 // pred_region
      %s139 = ssub.s32 %s10, 1
      // Predicated region
      $region13: #{se_reponse_pallas.1} parent=11 // pred_check
        %p140 = pneg %p57
      $region14: #{se_reponse_pallas.1} parent=11 // pred_check_branch
        %142 = sbr.rel (%p140) target = $region16
      $region15: #{se_reponse_pallas.1} parent=11 // pred_region
        _
      $region16: #{se_reponse_pallas.1} parent=11 // pred_fallthru
        _
      // Predicated region
      $region17: #{se_reponse_pallas.1} parent=11 // pred_check
        %p143 = pneg %p78
      $region18: #{se_reponse_pallas.1} parent=11 // pred_check_branch
        %145 = sbr.rel (%p143) target = $region20
      $region19: #{se_reponse_pallas.1} parent=11 // pred_region
        _
      $region20: #{se_reponse_pallas.1} parent=11 // pred_fallthru
        _
      // Predicated region
      $region21: #{se_reponse_pallas.1} parent=11 // pred_check
        %p146 = pneg %p99
      $region22: #{se_reponse_pallas.1} parent=11 // pred_check_branch
        %148 = sbr.rel (%p146) target = $region24
      $region23: #{se_reponse_pallas.1} parent=11 // pred_region
        _
      $region24: #{se_reponse_pallas.1} parent=11 // pred_fallthru
        _
    $region12: #{se_reponse_pallas.1} parent=5 // pred_fallthru
      _
    %p149 = scmp.lt.s32.totalorder %s10, 2
    // Predicated region
    $region25: #{se_reponse_pallas.1} parent=5 // pred_check
      %p150 = pneg %p149
    $region26: #{se_reponse_pallas.1} parent=5 // pred_check_branch
      %152 = sbr.rel (%p150) target = $region28
    $region27: #{se_reponse_pallas.1} parent=5 // pred_region
      // Predicated region
      $region29: #{se_reponse_pallas.1} parent=27 // pred_check
        %p153 = pneg %p30
      $region30: #{se_reponse_pallas.1} parent=27 // pred_check_branch
        %155 = sbr.rel (%p153) target = $region32
      $region31: #{se_reponse_pallas.1} parent=27 // pred_region
        %p156 = scmp.lt.s32.totalorder %s10, 1
        %s157 = scalar_select %p156, %s10, 1
        %s158 = smul.addr %s157, 8
        %s159 = scalar_lea.vmem %s0, %s158
      $region32: #{se_reponse_pallas.1} parent=27 // pred_fallthru
        _
    $region28: #{se_reponse_pallas.1} parent=5 // pred_fallthru
      _
    %p160 = scmp.le.s32.totalorder 1, %s10
    %p161 = scmp.lt.s32.totalorder %s10, 3
    %p162 = pnand %p160, %p161
    %p163 = pneg %p162
    // Predicated region
    $region33: #{se_reponse_pallas.1} parent=5 // pred_check
      _
    $region34: #{se_reponse_pallas.1} parent=5 // pred_check_branch
      %165 = sbr.rel (%p162) target = $region36
    $region35: #{se_reponse_pallas.1} parent=5 // pred_region
      %s166 = ssub.s32 %s10, 1
      %p167 = scmp.lt.s32.totalorder %s15, 1
      %s168 = scalar_select %p167, %s15, 1
      %s169 = smul.addr %s168, 8
      %s170 = scalar_lea.vmem %s0, %s169
      %p171 = pneg %p36
      %p172 = pneg %p33
      %p173 = pneg %p57
      %p174 = pneg %p54
      %p175 = pneg %p78
      %p176 = pneg %p75
      %p177 = pneg %p99
      %p178 = pneg %p96
      %p179 = pneg %p125
      %p180 = pneg %p122
      %p181 = scmp.lt.s32.totalorder %s15, 1
      %s182 = scalar_select %p181, %s15, 1
      %s183 = smul.addr %s182, 8
      %s184 = scalar_lea.vmem %s4, %s183
      %p185 = scmp.lt.s32.totalorder %s15, 1
      %s186 = scalar_select %p185, %s15, 1
      %s187 = smul.addr %s186, 8
      %s188 = scalar_lea.vmem %s0, %s187
      %p189 = scmp.lt.s32.totalorder %s15, 1
      %s190 = scalar_select %p189, %s15, 1
      %s191 = smul.addr %s190, 8
      %s192 = scalar_lea.vmem %s4, %s191
      %v193 = vld [vmem:[%s188] sm:$0xff]
      %v194 = vld [vmem:[%s1] sm:$0xff]
      %v195 = vld [vmem:[%s1 + $0x8] sm:$0xff]
      %v196 = vld [vmem:[%s1 + $0x10] sm:$0xff]
      %v197 = vld [vmem:[%s1 + $0x18] sm:$0xff]
      %v198 = vld [vmem:[%s1 + $0x20] sm:$0xff]
      %v199 = vld [vmem:[%s1 + $0x28] sm:$0xff]
      %v200 = vld [vmem:[%s1 + $0x30] sm:$0xff]
      %v201 = vld [vmem:[%s1 + $0x38] sm:$0xff]
      %v202 = vld [vmem:[%s1 + $0x40] sm:$0xff]
      %v203 = vld [vmem:[%s1 + $0x48] sm:$0xff]
      %v204 = vld [vmem:[%s1 + $0x50] sm:$0xff]
      %v205 = vld [vmem:[%s1 + $0x58] sm:$0xff]
      %v206 = vld [vmem:[%s1 + $0x60] sm:$0xff]
      %v207 = vld [vmem:[%s1 + $0x68] sm:$0xff]
      %v208 = vld [vmem:[%s1 + $0x70] sm:$0xff]
      %v209 = vld [vmem:[%s1 + $0x78] sm:$0xff]
      %210 = vmatprep.subr.mxu0 0.0
      %211 = vmatpush1.msra.mxu0 %v194
      %212 = vmatprep.subr.mxu0 0.0
      %213 = vmatpush1.msra.mxu0 %v195
      %214 = vmatprep.subr.mxu0 0.0
      %215 = vmatpush1.msra.mxu0 %v196
      %216 = vmatprep.subr.mxu0 0.0
      %217 = vmatpush1.msra.mxu0 %v197
      %218 = vmatprep.subr.mxu0 0.0
      %219 = vmatpush1.msra.mxu0 %v198
      %220 = vmatprep.subr.mxu0 0.0
      %221 = vmatpush1.msra.mxu0 %v199
      %222 = vmatprep.subr.mxu0 0.0
      %223 = vmatpush1.msra.mxu0 %v200
      %224 = vmatprep.subr.mxu0 0.0
      %225 = vmatpush1.msra.mxu0 %v201
      %226 = vmatprep.subr.mxu0 0.0
      %227 = vmatpush1.msra.mxu0 %v202
      %228 = vmatprep.subr.mxu0 0.0
      %229 = vmatpush1.msra.mxu0 %v203
      %230 = vmatprep.subr.mxu0 0.0
      %231 = vmatpush1.msra.mxu0 %v204
      %232 = vmatprep.subr.mxu0 0.0
      %233 = vmatpush1.msra.mxu0 %v205
      %234 = vmatprep.subr.mxu0 0.0
      %235 = vmatpush1.msra.mxu0 %v206
      %236 = vmatprep.subr.mxu0 0.0
      %237 = vmatpush1.msra.mxu0 %v207
      %238 = vmatprep.subr.mxu0 0.0
      %239 = vmatpush1.msra.mxu0 %v208
      %240 = vmatprep.subr.mxu0 0.0
      %241 = vmatpush1.msra.mxu0 %v209
      %242 = vmatprep.subr.mxu0 0.0
      %243 = vmatpush1.msra.mxu0 0.0
      %244 = vmatprep.subr.mxu0 0.0
      %245 = vmatpush1.msra.mxu0 0.0
      %246 = vmatprep.subr.mxu0 0.0
      %247 = vmatpush1.msra.mxu0 0.0
      %248 = vmatprep.subr.mxu0 0.0
      %249 = vmatpush1.msra.mxu0 0.0
      %250 = vmatprep.subr.mxu0 0.0
      %251 = vmatpush1.msra.mxu0 0.0
      %252 = vmatprep.subr.mxu0 0.0
      %253 = vmatpush1.msra.mxu0 0.0
      %254 = vmatprep.subr.mxu0 0.0
      %255 = vmatpush1.msra.mxu0 0.0
      %256 = vmatprep.subr.mxu0 0.0
      %257 = vmatpush1.msra.mxu0 0.0
      %258 = vmatprep.subr.mxu0 0.0
      %259 = vmatpush1.msra.mxu0 0.0
      %260 = vmatprep.subr.mxu0 0.0
      %261 = vmatpush1.msra.mxu0 0.0
      %262 = vmatprep.subr.mxu0 0.0
      %263 = vmatpush1.msra.mxu0 0.0
      %264 = vmatprep.subr.mxu0 0.0
      %265 = vmatpush1.msra.mxu0 0.0
      %266 = vmatprep.subr.mxu0 0.0
      %267 = vmatpush1.msra.mxu0 0.0
      %268 = vmatprep.subr.mxu0 0.0
      %269 = vmatpush1.msra.mxu0 0.0
      %270 = vmatprep.subr.mxu0 0.0
      %271 = vmatpush1.msra.mxu0 0.0
      %272 = vmatprep.subr.mxu0 0.0
      %273 = vmatpush1.msra.mxu0 0.0
      %274 = vmatprep.mubr.f32.mxu0 0.0
      %275 = vmatmul.mubr.f32.gmra.mrb[0].mxu0 %v193
      %v276 = vpop.f32.mrb[0].mxu0
      %v277 = vadd.f32 0.0, %v276
      %v278 = vpop.f32.mrb[0].mxu0
      %279 = vdwg.mxu0
      %v280 = vmax.f32 %v277, 0.0
      %v281 = vld [vmem:[%s2] sm:$0xff]
      %vm282 = vcmask 64512
      %v284 = vsel %vm282, %v280, 0
      %286 = vmatprep.subr.mxu0 0.0
      %287 = vmatpush1.msra.mxu0 %v281
      %288 = vmatprep.subr.mxu0 0.0
      %289 = vmatpush1.msra.mxu0 0.0
      %290 = vmatprep.subr.mxu0 0.0
      %291 = vmatpush1.msra.mxu0 0.0
      %292 = vmatprep.subr.mxu0 0.0
      %293 = vmatpush1.msra.mxu0 0.0
      %294 = vmatprep.subr.mxu0 0.0
      %295 = vmatpush1.msra.mxu0 0.0
      %296 = vmatprep.subr.mxu0 0.0
      %297 = vmatpush1.msra.mxu0 0.0
      %298 = vmatprep.subr.mxu0 0.0
      %299 = vmatpush1.msra.mxu0 0.0
      %300 = vmatprep.subr.mxu0 0.0
      %301 = vmatpush1.msra.mxu0 0.0
      %302 = vmatprep.subr.mxu0 0.0
      %303 = vmatpush1.msra.mxu0 0.0
      %304 = vmatprep.subr.mxu0 0.0
      %305 = vmatpush1.msra.mxu0 0.0
      %306 = vmatprep.subr.mxu0 0.0
      %307 = vmatpush1.msra.mxu0 0.0
      %308 = vmatprep.subr.mxu0 0.0
      %309 = vmatpush1.msra.mxu0 0.0
      %310 = vmatprep.subr.mxu0 0.0
      %311 = vmatpush1.msra.mxu0 0.0
      %312 = vmatprep.subr.mxu0 0.0
      %313 = vmatpush1.msra.mxu0 0.0
      %314 = vmatprep.subr.mxu0 0.0
      %315 = vmatpush1.msra.mxu0 0.0
      %316 = vmatprep.subr.mxu0 0.0
      %317 = vmatpush1.msra.mxu0 0.0
      %318 = vmatprep.subr.mxu0 0.0
      %319 = vmatpush1.msra.mxu0 0.0
      %320 = vmatprep.subr.mxu0 0.0
      %321 = vmatpush1.msra.mxu0 0.0
      %322 = vmatprep.subr.mxu0 0.0
      %323 = vmatpush1.msra.mxu0 0.0
      %324 = vmatprep.subr.mxu0 0.0
      %325 = vmatpush1.msra.mxu0 0.0
      %326 = vmatprep.subr.mxu0 0.0
      %327 = vmatpush1.msra.mxu0 0.0
      %328 = vmatprep.subr.mxu0 0.0
      %329 = vmatpush1.msra.mxu0 0.0
      %330 = vmatprep.subr.mxu0 0.0
      %331 = vmatpush1.msra.mxu0 0.0
      %332 = vmatprep.subr.mxu0 0.0
      %333 = vmatpush1.msra.mxu0 0.0
      %334 = vmatprep.subr.mxu0 0.0
      %335 = vmatpush1.msra.mxu0 0.0
      %336 = vmatprep.subr.mxu0 0.0
      %337 = vmatpush1.msra.mxu0 0.0
      %338 = vmatprep.subr.mxu0 0.0
      %339 = vmatpush1.msra.mxu0 0.0
      %340 = vmatprep.subr.mxu0 0.0
      %341 = vmatpush1.msra.mxu0 0.0
      %342 = vmatprep.subr.mxu0 0.0
      %343 = vmatpush1.msra.mxu0 0.0
      %344 = vmatprep.subr.mxu0 0.0
      %345 = vmatpush1.msra.mxu0 0.0
      %346 = vmatprep.subr.mxu0 0.0
      %347 = vmatpush1.msra.mxu0 0.0
      %348 = vmatprep.subr.mxu0 0.0
      %349 = vmatpush1.msra.mxu0 0.0
      %350 = vmatprep.mubr.f32.mxu0 0.0
      %351 = vmatmul.mubr.f32.gmra.mrb[0].mxu0 %v284
      %v352 = vpop.f32.mrb[0].mxu0
      %v353 = vadd.f32 0.0, %v352
      %v354 = vpop.f32.mrb[0].mxu0
      %355 = vdwg.mxu0
      %v356 = vsel %vm282, %v353, -inf
      %357 = vmax.xlane.f32.xlu0 %v356
      %v358 = vpop.xlane.xlu0 %357
      %v359 = vsub.f32 %v353, %v358
      %v360 = vmul.f32 %v359, 1.442695
      %v361 = vpow.pop %v360
      %v362 = vsel %vm282, %v361, 0.0
      %363 = vadd.xlane.f32.xlu0 %v362
      %v364 = vpop.xlane.xlu0 %363
      %v365 = vrcp.pop %v364
      %v366 = vmul.f32 %v361, %v365
      %v367 = vld [vmem:[%s3] sm:$0xff]
      %v369 = vsel %vm282, %v366, 0
      %371 = vmatprep.subr.mxu0 0.0
      %372 = vmatpush1.msra.mxu0 %v367
      %373 = vmatprep.subr.mxu0 0.0
      %374 = vmatpush1.msra.mxu0 0.0
      %375 = vmatprep.subr.mxu0 0.0
      %376 = vmatpush1.msra.mxu0 0.0
      %377 = vmatprep.subr.mxu0 0.0
      %378 = vmatpush1.msra.mxu0 0.0
      %379 = vmatprep.subr.mxu0 0.0
      %380 = vmatpush1.msra.mxu0 0.0
      %381 = vmatprep.subr.mxu0 0.0
      %382 = vmatpush1.msra.mxu0 0.0
      %383 = vmatprep.subr.mxu0 0.0
      %384 = vmatpush1.msra.mxu0 0.0
      %385 = vmatprep.subr.mxu0 0.0
      %386 = vmatpush1.msra.mxu0 0.0
      %387 = vmatprep.subr.mxu0 0.0
      %388 = vmatpush1.msra.mxu0 0.0
      %389 = vmatprep.subr.mxu0 0.0
      %390 = vmatpush1.msra.mxu0 0.0
      %391 = vmatprep.subr.mxu0 0.0
      %392 = vmatpush1.msra.mxu0 0.0
      %393 = vmatprep.subr.mxu0 0.0
      %394 = vmatpush1.msra.mxu0 0.0
      %395 = vmatprep.subr.mxu0 0.0
      %396 = vmatpush1.msra.mxu0 0.0
      %397 = vmatprep.subr.mxu0 0.0
      %398 = vmatpush1.msra.mxu0 0.0
      %399 = vmatprep.subr.mxu0 0.0
      %400 = vmatpush1.msra.mxu0 0.0
      %401 = vmatprep.subr.mxu0 0.0
      %402 = vmatpush1.msra.mxu0 0.0
      %403 = vmatprep.subr.mxu0 0.0
      %404 = vmatpush1.msra.mxu0 0.0
      %405 = vmatprep.subr.mxu0 0.0
      %406 = vmatpush1.msra.mxu0 0.0
      %407 = vmatprep.subr.mxu0 0.0
      %408 = vmatpush1.msra.mxu0 0.0
      %409 = vmatprep.subr.mxu0 0.0
      %410 = vmatpush1.msra.mxu0 0.0
      %411 = vmatprep.subr.mxu0 0.0
      %412 = vmatpush1.msra.mxu0 0.0
      %413 = vmatprep.subr.mxu0 0.0
      %414 = vmatpush1.msra.mxu0 0.0
      %415 = vmatprep.subr.mxu0 0.0
      %416 = vmatpush1.msra.mxu0 0.0
      %417 = vmatprep.subr.mxu0 0.0
      %418 = vmatpush1.msra.mxu0 0.0
      %419 = vmatprep.subr.mxu0 0.0
      %420 = vmatpush1.msra.mxu0 0.0
      %421 = vmatprep.subr.mxu0 0.0
      %422 = vmatpush1.msra.mxu0 0.0
      %423 = vmatprep.subr.mxu0 0.0
      %424 = vmatpush1.msra.mxu0 0.0
      %425 = vmatprep.subr.mxu0 0.0
      %426 = vmatpush1.msra.mxu0 0.0
      %427 = vmatprep.subr.mxu0 0.0
      %428 = vmatpush1.msra.mxu0 0.0
      %429 = vmatprep.subr.mxu0 0.0
      %430 = vmatpush1.msra.mxu0 0.0
      %431 = vmatprep.subr.mxu0 0.0
      %432 = vmatpush1.msra.mxu0 0.0
      %433 = vmatprep.subr.mxu0 0.0
      %434 = vmatpush1.msra.mxu0 0.0
      %435 = vmatprep.mubr.f32.mxu0 0.0
      %436 = vmatmul.mubr.f32.gmra.mrb[0].mxu0 %v369
      %v437 = vpop.f32.mrb[0].mxu0
      %v438 = vadd.f32 0.0, %v437
      %v439 = vpop.f32.mrb[0].mxu0
      %440 = vdwg.mxu0
      %v441 = vmul.f32 %v193, %v438
      %442 = vst [vmem:[%s192] sm:$0xff] %v441
      %p443 = scmp.lt.s32.totalorder %s15, 1
      %s444 = scalar_select %p443, %s15, 1
      %s445 = smul.addr %s444, 8
      %s446 = scalar_lea.vmem %s4, %s445
      // Predicated region
      $region37: #{se_reponse_pallas.1} parent=35 // pred_check
        %p447 = pneg %p122
      $region38: #{se_reponse_pallas.1} parent=35 // pred_check_branch
        %449 = sbr.rel (%p447) target = $region40
      $region39: #{se_reponse_pallas.1} parent=35 // pred_region
        _
      $region40: #{se_reponse_pallas.1} parent=35 // pred_fallthru
        _
    $region36: #{se_reponse_pallas.1} parent=5 // pred_fallthru
      _
    %p450 = scmp.le.s32.totalorder 2, %s10
    // Predicated region
    $region41: #{se_reponse_pallas.1} parent=5 // pred_check
      %p451 = pneg %p450
    $region42: #{se_reponse_pallas.1} parent=5 // pred_check_branch
      %453 = sbr.rel (%p451) target = $region44
    $region43: #{se_reponse_pallas.1} parent=5 // pred_region
      %s454 = ssub.s32 %s10, 2
      // Predicated region
      $region45: #{se_reponse_pallas.1} parent=43 // pred_check
        %p455 = pneg %p128
      $region46: #{se_reponse_pallas.1} parent=43 // pred_check_branch
        %457 = sbr.rel (%p455) target = $region48
      $region47: #{se_reponse_pallas.1} parent=43 // pred_region
        %p458 = scmp.lt.s32.totalorder %s16, 1
        %s459 = scalar_select %p458, %s16, 1
        %s460 = smul.addr %s459, 8
        %s461 = scalar_lea.vmem %s4, %s460
      $region48: #{se_reponse_pallas.1} parent=43 // pred_fallthru
        _
    $region44: #{se_reponse_pallas.1} parent=5 // pred_fallthru
      _
  $region6: #{se_reponse_pallas.1} parent=0 // loop_footer
    %s14 = sadd.s32 1, %s10
  $region7: #{se_reponse_pallas.1} parent=0 // loop_footer_branch
    %9 = sbr.rel target = $region3
  $region8: #{se_reponse_pallas.1} parent=0 // loop_exit
    _

</llo_original>
